<compile_context>
chip_gen: v6e
topology: v6e:2x2x1
jax: 0.10.0
libtpu: 0.0.40
codegen_flags: <defaults>
</compile_context>

<pallas_src>
import jax
import jax.numpy as jnp
from jax.experimental import pallas as pl
from jax.experimental.pallas import tpu as pltpu

H1, H2 = 128, 64  # hidden widths fixed by the PyTorch module


def actor_kernel(x_ref, w1_ref, b1_ref, w2_ref, b2_ref, w3_ref, b3_ref, out_ref):
    # Hidden layer 1: Linear(feature_dim, 128) + ReLU   (bf16 matmul, f32 acc)
    x = x_ref[...]                                              # (TILE_B, F) bf16
    h1 = jnp.dot(x, w1_ref[...], preferred_element_type=jnp.float32) + b1_ref[...]
    h1 = jnp.maximum(h1, 0.0)

    # Hidden layer 2: Linear(128, 64) + ReLU
    h2 = jnp.dot(h1.astype(jnp.bfloat16), w2_ref[...],
                 preferred_element_type=jnp.float32) + b2_ref[...]
    h2 = jnp.maximum(h2, 0.0)

    # Output layer: Linear(64, action_dim)
    logits = jnp.dot(h2.astype(jnp.bfloat16), w3_ref[...],
                     preferred_element_type=jnp.float32) + b3_ref[...]

    # Numerically-stable softmax over the last axis (f32).
    m = jnp.max(logits, axis=-1, keepdims=True)
    e = jnp.exp(logits - m)
    denom = jnp.sum(e, axis=-1, keepdims=True)
    out_ref[...] = e * pl.reciprocal(denom, approx=True)


def actor_forward(x, params, tile_b=1024):
    """x: (B, feature_dim) float32 -> (B, action_dim) float32 probabilities."""
    w1, b1, w2, b2, w3, b3 = params
    B, F = x.shape
    A = w3.shape[1]

    # Batch tile: multiple of 16 (bf16 sublane packing), capped at tile_b.
    def round_up(v, m):
        return ((v + m - 1) // m) * m

    TILE_B = min(tile_b, max(16, round_up(B, 16)))
    pad_B = round_up(B, TILE_B)
    if pad_B != B:
        x = jnp.pad(x, ((0, pad_B - B), (0, 0)))
    x = x.astype(jnp.bfloat16)

    grid = (pl.cdiv(pad_B, TILE_B),)
    const2 = lambda i: (0, 0)  # weights/biases: same block every step (VMEM-resident)

    out = pl.pallas_call(
        actor_kernel,
        out_shape=jax.ShapeDtypeStruct((pad_B, A), jnp.float32),
        grid=grid,
        in_specs=[
            pl.BlockSpec((TILE_B, F), lambda i: (i, 0)),  # x: tiled along batch
            pl.BlockSpec((F, H1), const2),                # w1
            pl.BlockSpec((1, H1), const2),                # b1
            pl.BlockSpec((H1, H2), const2),               # w2
            pl.BlockSpec((1, H2), const2),                # b2
            pl.BlockSpec((H2, A), const2),                # w3
            pl.BlockSpec((1, A), const2),                 # b3
        ],
        out_specs=pl.BlockSpec((TILE_B, A), lambda i: (i, 0)),
        compiler_params=pltpu.CompilerParams(
            dimension_semantics=("parallel",),  # megacore sharding on v7x
        ),
    )(x, w1, b1, w2, b2, w3, b3)
    return out[:B]


def init_params(key, feature_dim, action_dim):
    """Mirror torch.nn.Linear default init (uniform +/- 1/sqrt(fan_in)).

    Weights are stored transposed ((in, out)) and in bfloat16 for the MXU;
    biases stay float32.
    """
    def linear(key, fan_in, fan_out):
        kw, kb = jax.random.split(key)
        bound = 1.0 / jnp.sqrt(fan_in)
        w = jax.random.uniform(kw, (fan_in, fan_out), jnp.float32, -bound, bound)
        b = jax.random.uniform(kb, (1, fan_out), jnp.float32, -bound, bound)
        return w.astype(jnp.bfloat16), b

    k1, k2, k3 = jax.random.split(key, 3)
    w1, b1 = linear(k1, feature_dim, H1)
    w2, b2 = linear(k2, H1, H2)
    w3, b3 = linear(k3, H2, action_dim)
    return (w1, b1, w2, b2, w3, b3)


if __name__ == "__main__":
    feature_dim = 32
    action_dim = 4
    batch = 2

    key = jax.random.PRNGKey(0)
    k_params, k_x = jax.random.split(key)
    params = init_params(k_params, feature_dim, action_dim)
    x = jax.random.normal(k_x, (batch, feature_dim), jnp.float32)

    probs = actor_forward(x, params)
    jax.block_until_ready(probs)

    # Pure-JAX reference with the same bf16-matmul / f32-accumulate recipe.
    w1, b1, w2, b2, w3, b3 = params
    xb = x.astype(jnp.bfloat16)
    h1 = jnp.maximum(jnp.dot(xb, w1, preferred_element_type=jnp.float32) + b1, 0.0)
    h2 = jnp.maximum(jnp.dot(h1.astype(jnp.bfloat16), w2,
                             preferred_element_type=jnp.float32) + b2, 0.0)
    logits = jnp.dot(h2.astype(jnp.bfloat16), w3,
                     preferred_element_type=jnp.float32) + b3
    ref = jax.nn.softmax(logits, axis=-1)

    assert probs.shape == (batch, action_dim)
    assert jnp.allclose(probs, ref, atol=2e-3, rtol=2e-3), (probs, ref)
    assert jnp.allclose(jnp.sum(probs, axis=-1), 1.0, atol=2e-3)

    print("KERNEL_OK")
</pallas_src>

<mosaic_0001>
module attributes {stable_mosaic.version = 11 : i64} {
  func.func @actor_kernel(%arg0: i32, %arg1: memref<16x32xbf16, #tpu.memory_space<vmem>>, %arg2: memref<32x128xbf16, #tpu.memory_space<vmem>>, %arg3: memref<1x128xf32, #tpu.memory_space<vmem>>, %arg4: memref<128x64xbf16, #tpu.memory_space<vmem>>, %arg5: memref<1x64xf32, #tpu.memory_space<vmem>>, %arg6: memref<64x4xbf16, #tpu.memory_space<vmem>>, %arg7: memref<1x4xf32, #tpu.memory_space<vmem>>, %arg8: memref<16x4xf32, #tpu.memory_space<vmem>>) attributes {dimension_semantics = [#tpu.dimension_semantics<parallel>], iteration_bounds = array<i64: 1>, scalar_prefetch = 0 : i64, scratch_operands = 0 : i64, tpu.core_type = #tpu.core_type<tc>, window_params = [{transform_indices = @transform_0, window_bounds = array<i64: 16, 32>}, {pipeline_mode = #tpu.pipeline_mode<synchronous>, transform_indices = @transform_1, window_bounds = array<i64: 32, 128>}, {pipeline_mode = #tpu.pipeline_mode<synchronous>, transform_indices = @transform_2, window_bounds = array<i64: 1, 128>}, {pipeline_mode = #tpu.pipeline_mode<synchronous>, transform_indices = @transform_3, window_bounds = array<i64: 128, 64>}, {pipeline_mode = #tpu.pipeline_mode<synchronous>, transform_indices = @transform_4, window_bounds = array<i64: 1, 64>}, {pipeline_mode = #tpu.pipeline_mode<synchronous>, transform_indices = @transform_5, window_bounds = array<i64: 64, 4>}, {pipeline_mode = #tpu.pipeline_mode<synchronous>, transform_indices = @transform_6, window_bounds = array<i64: 1, 4>}, {transform_indices = @transform_7, window_bounds = array<i64: 16, 4>}]} {
    %c0 = arith.constant 0 : index
    %c0_0 = arith.constant 0 : index
    %0 = vector.load %arg1[%c0, %c0_0] : memref<16x32xbf16, #tpu.memory_space<vmem>>, vector<16x32xbf16>
    %c0_1 = arith.constant 0 : index
    %c0_2 = arith.constant 0 : index
    %1 = vector.load %arg2[%c0_1, %c0_2] : memref<32x128xbf16, #tpu.memory_space<vmem>>, vector<32x128xbf16>
    %cst = arith.constant dense<0.000000e+00> : vector<16x128xf32>
    %2 = tpu.matmul %0, %1, %cst {dimension_numbers = #tpu.dot_dimension_numbers<[1], [0], [0], [1], [0, 0, 1, 1], [], []>} : vector<16x32xbf16>, vector<32x128xbf16>, vector<16x128xf32> -> vector<16x128xf32>
    %c0_3 = arith.constant 0 : index
    %c0_4 = arith.constant 0 : index
    %3 = vector.load %arg3[%c0_3, %c0_4] : memref<1x128xf32, #tpu.memory_space<vmem>>, vector<1x128xf32>
    %4 = vector.broadcast %3 : vector<1x128xf32> to vector<16x128xf32>
    %5 = arith.addf %2, %4 : vector<16x128xf32>
    %cst_5 = arith.constant 0.000000e+00 : f32
    %6 = vector.broadcast %cst_5 : f32 to vector<16x128xf32>
    %7 = arith.maximumf %5, %6 : vector<16x128xf32>
    %8 = arith.truncf %7 : vector<16x128xf32> to vector<16x128xbf16>
    %c0_6 = arith.constant 0 : index
    %c0_7 = arith.constant 0 : index
    %9 = vector.load %arg4[%c0_6, %c0_7] : memref<128x64xbf16, #tpu.memory_space<vmem>>, vector<128x64xbf16>
    %cst_8 = arith.constant dense<0.000000e+00> : vector<16x64xf32>
    %10 = tpu.matmul %8, %9, %cst_8 {dimension_numbers = #tpu.dot_dimension_numbers<[1], [0], [0], [1], [0, 0, 1, 1], [], []>} : vector<16x128xbf16>, vector<128x64xbf16>, vector<16x64xf32> -> vector<16x64xf32>
    %c0_9 = arith.constant 0 : index
    %c0_10 = arith.constant 0 : index
    %11 = vector.load %arg5[%c0_9, %c0_10] : memref<1x64xf32, #tpu.memory_space<vmem>>, vector<1x64xf32>
    %12 = vector.broadcast %11 : vector<1x64xf32> to vector<16x64xf32>
    %13 = arith.addf %10, %12 : vector<16x64xf32>
    %cst_11 = arith.constant 0.000000e+00 : f32
    %14 = vector.broadcast %cst_11 : f32 to vector<16x64xf32>
    %15 = arith.maximumf %13, %14 : vector<16x64xf32>
    %16 = arith.truncf %15 : vector<16x64xf32> to vector<16x64xbf16>
    %c0_12 = arith.constant 0 : index
    %c0_13 = arith.constant 0 : index
    %17 = vector.load %arg6[%c0_12, %c0_13] : memref<64x4xbf16, #tpu.memory_space<vmem>>, vector<64x4xbf16>
    %cst_14 = arith.constant dense<0.000000e+00> : vector<16x4xf32>
    %18 = tpu.matmul %16, %17, %cst_14 {dimension_numbers = #tpu.dot_dimension_numbers<[1], [0], [0], [1], [0, 0, 1, 1], [], []>} : vector<16x64xbf16>, vector<64x4xbf16>, vector<16x4xf32> -> vector<16x4xf32>
    %c0_15 = arith.constant 0 : index
    %c0_16 = arith.constant 0 : index
    %19 = vector.load %arg7[%c0_15, %c0_16] : memref<1x4xf32, #tpu.memory_space<vmem>>, vector<1x4xf32>
    %20 = vector.broadcast %19 : vector<1x4xf32> to vector<16x4xf32>
    %21 = arith.addf %18, %20 : vector<16x4xf32>
    %cst_17 = arith.constant dense<0xFF800000> : vector<16xf32>
    %22 = vector.multi_reduction <maximumf>, %21, %cst_17 [1] : vector<16x4xf32> to vector<16xf32>
    %23 = vector.shape_cast %22 : vector<16xf32> to vector<16x1xf32>
    %24 = vector.broadcast %23 : vector<16x1xf32> to vector<16x4xf32>
    %25 = arith.subf %21, %24 : vector<16x4xf32>
    %26 = math.exp %25 : vector<16x4xf32>
    %cst_18 = arith.constant dense<0.000000e+00> : vector<16xf32>
    %27 = vector.multi_reduction <add>, %26, %cst_18 [1] : vector<16x4xf32> to vector<16xf32>
    %28 = vector.shape_cast %27 : vector<16xf32> to vector<16x1xf32>
    %29 = tpu.reciprocal %28 {approx = true} : vector<16x1xf32> -> vector<16x1xf32>
    %30 = vector.broadcast %29 : vector<16x1xf32> to vector<16x4xf32>
    %31 = arith.mulf %26, %30 : vector<16x4xf32>
    %c0_19 = arith.constant 0 : index
    %c0_20 = arith.constant 0 : index
    %32 = vector.load %arg8[%c0_19, %c0_20] : memref<16x4xf32, #tpu.memory_space<vmem>>, vector<16x4xf32>
    tpu.vector_store %arg8[%c0_19, %c0_20], %31 {strides = array<i32>} : memref<16x4xf32, #tpu.memory_space<vmem>>, vector<16x4xf32>,
    return
  }
  func.func @transform_0(%arg0: i32) -> (i32, i32) {
    %c0_i32 = arith.constant 0 : i32
    %c0_i32_0 = arith.constant 0 : i32
    return %arg0, %c0_i32 : i32, i32
  }
  func.func @transform_1(%arg0: i32) -> (i32, i32) {
    %c0_i32 = arith.constant 0 : i32
    %c0_i32_0 = arith.constant 0 : i32
    %c0_i32_1 = arith.constant 0 : i32
    return %c0_i32, %c0_i32_0 : i32, i32
  }
  func.func @transform_2(%arg0: i32) -> (i32, i32) {
    %c0_i32 = arith.constant 0 : i32
    %c0_i32_0 = arith.constant 0 : i32
    %c0_i32_1 = arith.constant 0 : i32
    return %c0_i32, %c0_i32_0 : i32, i32
  }
  func.func @transform_3(%arg0: i32) -> (i32, i32) {
    %c0_i32 = arith.constant 0 : i32
    %c0_i32_0 = arith.constant 0 : i32
    %c0_i32_1 = arith.constant 0 : i32
    return %c0_i32, %c0_i32_0 : i32, i32
  }
  func.func @transform_4(%arg0: i32) -> (i32, i32) {
    %c0_i32 = arith.constant 0 : i32
    %c0_i32_0 = arith.constant 0 : i32
    %c0_i32_1 = arith.constant 0 : i32
    return %c0_i32, %c0_i32_0 : i32, i32
  }
  func.func @transform_5(%arg0: i32) -> (i32, i32) {
    %c0_i32 = arith.constant 0 : i32
    %c0_i32_0 = arith.constant 0 : i32
    %c0_i32_1 = arith.constant 0 : i32
    return %c0_i32, %c0_i32_0 : i32, i32
  }
  func.func @transform_6(%arg0: i32) -> (i32, i32) {
    %c0_i32 = arith.constant 0 : i32
    %c0_i32_0 = arith.constant 0 : i32
    %c0_i32_1 = arith.constant 0 : i32
    return %c0_i32, %c0_i32_0 : i32, i32
  }
  func.func @transform_7(%arg0: i32) -> (i32, i32) {
    %c0_i32 = arith.constant 0 : i32
    %c0_i32_0 = arith.constant 0 : i32
    return %arg0, %c0_i32 : i32, i32
  }
}

</mosaic_0001>

<llo_original>
// kernel: tpu_custom_call.1
$region0: #{tpu_custom_call.1}
  #allocation0 [shape = 'u32[]', space=smem, size = 0x4, offset = 0x4, fixed_abs, tag = 'smem constant byte address 0x4 - core index']
  #allocation1 [shape = 'u32[144,128]{1,0:T(1,128)}', space=vmem, size = 0x12000, scoped, tag = 'internal scratch']
  %s0 = inlined_call_operand.vmem [shape: bf16[16,32], index: 0, kind: input, shape index: {}]
  %s1 = inlined_call_operand.vmem [shape: bf16[32,128], index: 1, kind: input, shape index: {}]
  %s2 = inlined_call_operand.vmem [shape: f32[1,128], index: 2, kind: input, shape index: {}]
  %s3 = inlined_call_operand.vmem [shape: bf16[128,64], index: 3, kind: input, shape index: {}]
  %s4 = inlined_call_operand.vmem [shape: f32[1,64], index: 4, kind: input, shape index: {}]
  %s5 = inlined_call_operand.vmem [shape: bf16[64,4], index: 5, kind: input, shape index: {}]
  %s6 = inlined_call_operand.vmem [shape: f32[1,4], index: 6, kind: input, shape index: {}]
  %s7 = inlined_call_operand.vmem [shape: f32[16,4], index: 7, kind: output, shape index: {}]
  %s8 = sld [smem:[#allocation0]]
  $region38: #{tpu_custom_call.1} parent=0
    _
  %s10 = ssub.s32 1, %s8
  %s11 = scalar_select 0, %s10, %s8
  // Predicated region
  $region2: #{tpu_custom_call.1} parent=0 // pred_check
    _
  $region3: #{tpu_custom_call.1} parent=0 // pred_check_branch
    %13 = sbr.rel (0) target = $region5
  $region4: #{tpu_custom_call.1} parent=0 // pred_region
    _
  $region5: #{tpu_custom_call.1} parent=0 // pred_fallthru
    _
  // Predicated region
  $region6: #{tpu_custom_call.1} parent=0 // pred_check
    _
  $region7: #{tpu_custom_call.1} parent=0 // pred_check_branch
    %15 = sbr.rel (0) target = $region9
  $region8: #{tpu_custom_call.1} parent=0 // pred_region
    _
  $region9: #{tpu_custom_call.1} parent=0 // pred_fallthru
    _
  // Predicated region
  $region10: #{tpu_custom_call.1} parent=0 // pred_check
    _
  $region11: #{tpu_custom_call.1} parent=0 // pred_check_branch
    %17 = sbr.rel (0) target = $region13
  $region12: #{tpu_custom_call.1} parent=0 // pred_region
    _
  $region13: #{tpu_custom_call.1} parent=0 // pred_fallthru
    _
  // Predicated region
  $region14: #{tpu_custom_call.1} parent=0 // pred_check
    _
  $region15: #{tpu_custom_call.1} parent=0 // pred_check_branch
    %19 = sbr.rel (0) target = $region17
  $region16: #{tpu_custom_call.1} parent=0 // pred_region
    _
  $region17: #{tpu_custom_call.1} parent=0 // pred_fallthru
    _
  // Predicated region
  $region18: #{tpu_custom_call.1} parent=0 // pred_check
    _
  $region19: #{tpu_custom_call.1} parent=0 // pred_check_branch
    %21 = sbr.rel (0) target = $region21
  $region20: #{tpu_custom_call.1} parent=0 // pred_region
    _
  $region21: #{tpu_custom_call.1} parent=0 // pred_fallthru
    _
  // Predicated region
  $region22: #{tpu_custom_call.1} parent=0 // pred_check
    _
  $region23: #{tpu_custom_call.1} parent=0 // pred_check_branch
    %23 = sbr.rel (0) target = $region25
  $region24: #{tpu_custom_call.1} parent=0 // pred_region
    _
  $region25: #{tpu_custom_call.1} parent=0 // pred_fallthru
    _
  // Predicated region
  $region26: #{tpu_custom_call.1} parent=0 // pred_check
    _
  $region27: #{tpu_custom_call.1} parent=0 // pred_check_branch
    %25 = sbr.rel (0) target = $region29
  $region28: #{tpu_custom_call.1} parent=0 // pred_region
    _
  $region29: #{tpu_custom_call.1} parent=0 // pred_fallthru
    _
  %v27 = vld [vmem:[%s0] sm:$0xf]
  %v28 = vld [vmem:[%s0 + $0x4] sm:$0xf]
  %v29 = vld [vmem:[%s1] sm:$0xf]
  %v30 = vld [vmem:[%s1 + $0x4] sm:$0xf]
  %v31 = vld [vmem:[%s1 + $0x8] sm:$0xf]
  %v32 = vld [vmem:[%s1 + $0xc] sm:$0xf]
  %v33 = vld [vmem:[%s2] sm:$0x1]
  %v35 = vlaneseq
  %v36 = vshrl.u32 %v35, 7
  %v37 = vsub.s32 0, %v36
  %v38 = vrot.slane %v33, %v37
  %v42 = vunpack.c.l.b16 %v27
  %v43 = vunpack.c.l.b16 %v28
  %v44 = vpack.c.b16 %v43, %v42
  %v49 = vunpack.c.l.b16 %v29
  %v50 = vunpack.c.l.b16 %v30
  %v51 = vunpack.c.l.b16 %v31
  %v52 = vunpack.c.l.b16 %v32
  %v53 = vpack.c.b16 %v50, %v49
  %v54 = vpack.c.b16 %v52, %v51
  %vm57 = vcmask 261120
  %v59 = vsel %vm57, %v44, 0
  %61 = vmatprep.subr.bf16.mxu0 0
  %62 = vmatpush1.bf16.msra.mxu0 0
  %63 = vmatprep.subr.bf16.mxu0 0
  %64 = vmatpush1.bf16.msra.mxu0 0
  %65 = vmatprep.subr.bf16.mxu0 0
  %66 = vmatpush1.bf16.msra.mxu0 0
  %67 = vmatprep.subr.bf16.mxu0 0
  %68 = vmatpush1.bf16.msra.mxu0 0
  %69 = vmatprep.subr.bf16.mxu0 0
  %70 = vmatpush1.bf16.msra.mxu0 0
  %71 = vmatprep.subr.bf16.mxu0 0
  %72 = vmatpush1.bf16.msra.mxu0 0
  %73 = vmatprep.subr.bf16.mxu0 0
  %74 = vmatpush1.bf16.msra.mxu0 %v54
  %75 = vmatprep.subr.bf16.mxu0 0
  %76 = vmatpush1.bf16.msra.mxu0 %v53
  %77 = vmatprep.subr.bf16.mxu0 0
  %78 = vmatpush2.bf16.msra.mxu0 0
  %79 = vmatprep.subr.bf16.mxu0 0
  %80 = vmatpush2.bf16.msra.mxu0 0
  %81 = vmatprep.subr.bf16.mxu0 0
  %82 = vmatpush2.bf16.msra.mxu0 0
  %83 = vmatprep.subr.bf16.mxu0 0
  %84 = vmatpush2.bf16.msra.mxu0 0
  %85 = vmatprep.subr.bf16.mxu0 0
  %86 = vmatpush2.bf16.msra.mxu0 0
  %87 = vmatprep.subr.bf16.mxu0 0
  %88 = vmatpush2.bf16.msra.mxu0 0
  %89 = vmatprep.subr.bf16.mxu0 0
  %90 = vmatpush2.bf16.msra.mxu0 0
  %91 = vmatprep.subr.bf16.mxu0 0
  %92 = vmatpush2.bf16.msra.mxu0 0
  %93 = vmatprep.mubr.bf16.mxu0 0
  %94 = vmatmul.mubr.bf16.gmra.mxu0 %v59
  %v95 = vpop.f32.mrf.mxu0
  %v96 = vadd.f32 %v38, %v95
  %v97 = vpop.f32.mrf.mxu0
  %v98 = vpop.f32.mrf.mxu0
  %v99 = vadd.f32 %v38, %v98
  %v100 = vpop.f32.mrf.mxu0
  %101 = vdwg.mxu0
  %v102 = vmax.f32 %v96, 0.0
  %v103 = vmax.f32 %v99, 0.0
  %v104 = vpack.c.bf16 %v103, %v102
  %v105 = vld [vmem:[%s3] sm:$0xf]
  %v106 = vld [vmem:[%s3 + $0x4] sm:$0xf]
  %v107 = vld [vmem:[%s3 + $0x8] sm:$0xf]
  %v108 = vld [vmem:[%s3 + $0xc] sm:$0xf]
  %v109 = vld [vmem:[%s3 + $0x10] sm:$0xf]
  %v110 = vld [vmem:[%s3 + $0x14] sm:$0xf]
  %v111 = vld [vmem:[%s3 + $0x18] sm:$0xf]
  %v112 = vld [vmem:[%s3 + $0x1c] sm:$0xf]
  %v113 = vld [vmem:[%s3 + $0x20] sm:$0xf]
  %v114 = vld [vmem:[%s3 + $0x24] sm:$0xf]
  %v115 = vld [vmem:[%s3 + $0x28] sm:$0xf]
  %v116 = vld [vmem:[%s3 + $0x2c] sm:$0xf]
  %v117 = vld [vmem:[%s3 + $0x30] sm:$0xf]
  %v118 = vld [vmem:[%s3 + $0x34] sm:$0xf]
  %v119 = vld [vmem:[%s3 + $0x38] sm:$0xf]
  %v120 = vld [vmem:[%s3 + $0x3c] sm:$0xf]
  %v121 = vld [vmem:[%s4] sm:$0x1]
  %v123 = vlaneseq
  %v124 = vshrl.u32 %v123, 7
  %v125 = vsub.s32 0, %v124
  %v126 = vrot.slane %v121, %v125
  %v144 = vunpack.c.l.b16 %v105
  %v145 = vunpack.c.l.b16 %v106
  %v146 = vunpack.c.l.b16 %v107
  %v147 = vunpack.c.l.b16 %v108
  %v148 = vunpack.c.l.b16 %v109
  %v149 = vunpack.c.l.b16 %v110
  %v150 = vunpack.c.l.b16 %v111
  %v151 = vunpack.c.l.b16 %v112
  %v152 = vunpack.c.l.b16 %v113
  %v153 = vunpack.c.l.b16 %v114
  %v154 = vunpack.c.l.b16 %v115
  %v155 = vunpack.c.l.b16 %v116
  %v156 = vunpack.c.l.b16 %v117
  %v157 = vunpack.c.l.b16 %v118
  %v158 = vunpack.c.l.b16 %v119
  %v159 = vunpack.c.l.b16 %v120
  %v160 = vpack.c.b16 %v145, %v144
  %v161 = vpack.c.b16 %v147, %v146
  %v162 = vpack.c.b16 %v149, %v148
  %v163 = vpack.c.b16 %v151, %v150
  %v164 = vpack.c.b16 %v153, %v152
  %v165 = vpack.c.b16 %v155, %v154
  %v166 = vpack.c.b16 %v157, %v156
  %v167 = vpack.c.b16 %v159, %v158
  %176 = vmatprep.subr.bf16.mxu0 0
  %177 = vmatpush1.bf16.msra.mxu0 %v167
  %178 = vmatprep.subr.bf16.mxu0 0
  %179 = vmatpush1.bf16.msra.mxu0 %v166
  %180 = vmatprep.subr.bf16.mxu0 0
  %181 = vmatpush1.bf16.msra.mxu0 %v165
  %182 = vmatprep.subr.bf16.mxu0 0
  %183 = vmatpush1.bf16.msra.mxu0 %v164
  %184 = vmatprep.subr.bf16.mxu0 0
  %185 = vmatpush1.bf16.msra.mxu0 %v163
  %186 = vmatprep.subr.bf16.mxu0 0
  %187 = vmatpush1.bf16.msra.mxu0 %v162
  %188 = vmatprep.subr.bf16.mxu0 0
  %189 = vmatpush1.bf16.msra.mxu0 %v161
  %190 = vmatprep.subr.bf16.mxu0 0
  %191 = vmatpush1.bf16.msra.mxu0 %v160
  %192 = vmatprep.subr.bf16.mxu0 0
  %193 = vmatpush2.bf16.msra.mxu0 0
  %194 = vmatprep.subr.bf16.mxu0 0
  %195 = vmatpush2.bf16.msra.mxu0 0
  %196 = vmatprep.subr.bf16.mxu0 0
  %197 = vmatpush2.bf16.msra.mxu0 0
  %198 = vmatprep.subr.bf16.mxu0 0
  %199 = vmatpush2.bf16.msra.mxu0 0
  %200 = vmatprep.subr.bf16.mxu0 0
  %201 = vmatpush2.bf16.msra.mxu0 0
  %202 = vmatprep.subr.bf16.mxu0 0
  %203 = vmatpush2.bf16.msra.mxu0 0
  %204 = vmatprep.subr.bf16.mxu0 0
  %205 = vmatpush2.bf16.msra.mxu0 0
  %206 = vmatprep.subr.bf16.mxu0 0
  %207 = vmatpush2.bf16.msra.mxu0 0
  %208 = vmatprep.mubr.bf16.mxu0 0
  %209 = vmatmul.mubr.bf16.gmra.mxu0 %v104
  %v210 = vpop.f32.mrf.mxu0
  %v211 = vadd.f32 %v126, %v210
  %v212 = vpop.f32.mrf.mxu0
  %v213 = vpop.f32.mrf.mxu0
  %v214 = vadd.f32 %v126, %v213
  %v215 = vpop.f32.mrf.mxu0
  %216 = vdwg.mxu0
  %v217 = vmax.f32 %v211, 0.0
  %v218 = vmax.f32 %v214, 0.0
  %v219 = vpack.c.bf16 %v218, %v217
  %v220 = vld [vmem:[%s5] sm:$0xf]
  %v221 = vld [vmem:[%s5 + $0x4] sm:$0xf]
  %v222 = vld [vmem:[%s5 + $0x8] sm:$0xf]
  %v223 = vld [vmem:[%s5 + $0xc] sm:$0xf]
  %v224 = vld [vmem:[%s5 + $0x10] sm:$0xf]
  %v225 = vld [vmem:[%s5 + $0x14] sm:$0xf]
  %v226 = vld [vmem:[%s5 + $0x18] sm:$0xf]
  %v227 = vld [vmem:[%s5 + $0x1c] sm:$0xf]
  %v228 = vld [vmem:[%s6] sm:$0x1]
  %v230 = vlaneseq
  %v231 = vshrl.u32 %v230, 7
  %v232 = vsub.s32 0, %v231
  %v233 = vrot.slane %v228, %v232
  %v243 = vunpack.c.l.b16 %v220
  %v244 = vunpack.c.l.b16 %v221
  %v245 = vunpack.c.l.b16 %v222
  %v246 = vunpack.c.l.b16 %v223
  %v247 = vunpack.c.l.b16 %v224
  %v248 = vunpack.c.l.b16 %v225
  %v249 = vunpack.c.l.b16 %v226
  %v250 = vunpack.c.l.b16 %v227
  %v251 = vpack.c.b16 %v244, %v243
  %v252 = vpack.c.b16 %v246, %v245
  %v253 = vpack.c.b16 %v248, %v247
  %v254 = vpack.c.b16 %v250, %v249
  %vm259 = vcmask 523264
  %v261 = vsel %vm259, %v219, 0
  %263 = vmatprep.subr.bf16.mxu0 0
  %264 = vmatpush1.bf16.msra.mxu0 0
  %265 = vmatprep.subr.bf16.mxu0 0
  %266 = vmatpush1.bf16.msra.mxu0 0
  %267 = vmatprep.subr.bf16.mxu0 0
  %268 = vmatpush1.bf16.msra.mxu0 0
  %269 = vmatprep.subr.bf16.mxu0 0
  %270 = vmatpush1.bf16.msra.mxu0 0
  %271 = vmatprep.subr.bf16.mxu0 0
  %272 = vmatpush1.bf16.msra.mxu0 %v254
  %273 = vmatprep.subr.bf16.mxu0 0
  %274 = vmatpush1.bf16.msra.mxu0 %v253
  %275 = vmatprep.subr.bf16.mxu0 0
  %276 = vmatpush1.bf16.msra.mxu0 %v252
  %277 = vmatprep.subr.bf16.mxu0 0
  %278 = vmatpush1.bf16.msra.mxu0 %v251
  %279 = vmatprep.subr.bf16.mxu0 0
  %280 = vmatpush2.bf16.msra.mxu0 0
  %281 = vmatprep.subr.bf16.mxu0 0
  %282 = vmatpush2.bf16.msra.mxu0 0
  %283 = vmatprep.subr.bf16.mxu0 0
  %284 = vmatpush2.bf16.msra.mxu0 0
  %285 = vmatprep.subr.bf16.mxu0 0
  %286 = vmatpush2.bf16.msra.mxu0 0
  %287 = vmatprep.subr.bf16.mxu0 0
  %288 = vmatpush2.bf16.msra.mxu0 0
  %289 = vmatprep.subr.bf16.mxu0 0
  %290 = vmatpush2.bf16.msra.mxu0 0
  %291 = vmatprep.subr.bf16.mxu0 0
  %292 = vmatpush2.bf16.msra.mxu0 0
  %293 = vmatprep.subr.bf16.mxu0 0
  %294 = vmatpush2.bf16.msra.mxu0 0
  %295 = vmatprep.mubr.bf16.mxu0 0
  %296 = vmatmul.mubr.bf16.gmra.mxu0 %v261
  %v297 = vpop.f32.mrf.mxu0
  %v298 = vadd.f32 %v233, %v297
  %v299 = vpop.f32.mrf.mxu0
  %v300 = vpop.f32.mrf.mxu0
  %v301 = vadd.f32 %v233, %v300
  %v302 = vpop.f32.mrf.mxu0
  %303 = vdwg.mxu0
  %vm304 = vcmask 31744
  %v305 = vsel %vm304, %v298, -inf
  %306 = vmax.xlane.f32.xlu0 %v305
  %v307 = vpop.xlane.xlu0 %306
  %v308 = vsel %vm304, %v301, -inf
  %309 = vmax.xlane.f32.xlu0 %v308
  %v310 = vpop.xlane.xlu0 %309
  %v311 = vsub.f32 %v298, %v307
  %v312 = vsub.f32 %v301, %v310
  %v313 = vmul.f32 %v311, 1.442695
  %v314 = vpow.pop %v313
  %v315 = vmul.f32 %v312, 1.442695
  %v316 = vpow.pop %v315
  %v317 = vsel %vm304, %v314, 0.0
  %318 = vadd.xlane.f32.xlu0 %v317
  %v319 = vpop.xlane.xlu0 %318
  %v320 = vsel %vm304, %v316, 0.0
  %321 = vadd.xlane.f32.xlu0 %v320
  %v322 = vpop.xlane.xlu0 %321
  %v323 = vrcp.pop %v319
  %v324 = vrcp.pop %v322
  %v325 = vmul.f32 %v314, %v323
  %v326 = vmul.f32 %v316, %v324
  %327 = vst.msk [vmem:[%s7] sm:$0xff] %vm304, %v325
  %328 = vst.msk [vmem:[%s7 + $0x8] sm:$0xff] %vm304, %v326
  // Predicated region
  $region30: #{tpu_custom_call.1} parent=0 // pred_check
    _
  $region31: #{tpu_custom_call.1} parent=0 // pred_check_branch
    %330 = sbr.rel (0) target = $region33
  $region32: #{tpu_custom_call.1} parent=0 // pred_region
    _
  $region33: #{tpu_custom_call.1} parent=0 // pred_fallthru
    _
  // Predicated region
  $region34: #{tpu_custom_call.1} parent=0 // pred_check
    _
  $region35: #{tpu_custom_call.1} parent=0 // pred_check_branch
    %332 = sbr.rel (0) target = $region37
  $region36: #{tpu_custom_call.1} parent=0 // pred_region
    _
  $region37: #{tpu_custom_call.1} parent=0 // pred_fallthru
    _

</llo_original>
